<compile_context>
chip_gen: v7x
topology: tpu7x:2x2x1
jax: 0.10.0
libtpu: 0.0.40
codegen_flags: <defaults>
</compile_context>

<pallas_src>
from functools import partial

import jax
import jax.numpy as jnp
from jax.experimental import pallas as pl
from jax.experimental.pallas import tpu as pltpu

_INV_SQRT2 = 0.7071067811865476


def _gelu_exact(x):
    # Matches torch.nn.functional.gelu default (erf-based, exact).
    return 0.5 * x * (1.0 + jax.lax.erf(x * _INV_SQRT2))


# ----------------------------------------------------------------------------
# Fused Pallas kernel (channels-major):
#   h = gelu(W1 @ x_fno + b1)                      (ChannelMLP layer 1)
#   y = [Ww(+I) | W2] @ [x ; h] + (bw + b2)        (skip conv + residual + MLP-2)
#   y = gelu(y)                                    (if not last layer)
# ----------------------------------------------------------------------------
def _fno_fused_kernel(x_ref, xf_ref, wcat_ref, bcat_ref, w1_ref, b1_ref,
                      out_ref, *, apply_act):
    x = x_ref[0]                                   # (C, T)  original input block
    xf = xf_ref[0]                                 # (C, T)  spectral-conv output
    # ChannelMLP layer 1 (1x1 conv) + exact GELU; hidden dim is zero-padded.
    h = _gelu_exact(
        jnp.dot(w1_ref[...], xf, preferred_element_type=jnp.float32)
        + b1_ref[...])                             # (Ch_pad, T)
    # Skip conv (+ identity residual folded into the weights) and MLP layer 2
    # fused into a single MXU contraction over K = C + Ch_pad.
    z = jnp.concatenate([x, h], axis=0)            # (C + Ch_pad, T)
    y = jnp.dot(wcat_ref[...], z,
                preferred_element_type=jnp.float32) + bcat_ref[...]
    if apply_act:
        y = _gelu_exact(y)
    out_ref[0] = y.astype(out_ref.dtype)


def fno_fused(x_cm, xf_cm, w_cat, b_cat, w1_p, b1_p, *, apply_act, hw_tile=None):
    B, C, HW = x_cm.shape
    Kcat = w_cat.shape[1]
    Chp = w1_p.shape[0]
    if hw_tile is None or hw_tile >= HW:
        hw_tile = HW                               # one lane-dense block per batch
    assert HW % hw_tile == 0, "hw_tile must divide H*W (no remainder handling)"
    grid = (B, HW // hw_tile)

    kernel = partial(_fno_fused_kernel, apply_act=apply_act)
    tok_spec = pl.BlockSpec((1, C, hw_tile), lambda b, t: (b, 0, t))
    return pl.pallas_call(
        kernel,
        out_shape=jax.ShapeDtypeStruct((B, C, HW), x_cm.dtype),
        grid=grid,
        in_specs=[
            tok_spec,                                        # x      (B, C, HW)
            tok_spec,                                        # x_fno  (B, C, HW)
            pl.BlockSpec((C, Kcat), lambda b, t: (0, 0)),    # [Ww(+I) | W2_pad]
            pl.BlockSpec((C, 1),    lambda b, t: (0, 0)),    # bw + b2
            pl.BlockSpec((Chp, C),  lambda b, t: (0, 0)),    # W1 (zero-padded)
            pl.BlockSpec((Chp, 1),  lambda b, t: (0, 0)),    # b1 (zero-padded)
        ],
        out_specs=tok_spec,
        compiler_params=pltpu.CompilerParams(
            dimension_semantics=("parallel", "parallel")),
    )(x_cm, xf_cm, w_cat, b_cat, w1_p, b1_p)


# ----------------------------------------------------------------------------
# FNOBlock forward (output_shape=None -> transform() is the identity)
# ----------------------------------------------------------------------------
def fno_block_forward(x, params, *, n_modes, model_type, idx, n_layers):
    B, C, H, W = x.shape
    m1, m2c = n_modes  # already stored with last mode = n_modes[-1] // 2 + 1

    # --- SpectralConv --------------------------------------------------------
    # TODO(synk): rfftn / fftshift / irfftn have no Pallas equivalent; kept in
    # JAX.  The mode weighting (modes * R) is left to XLA so it fuses with the
    # FFT slicing instead of paying a pallas_call launch for a few KB of data.
    xh = jnp.fft.rfftn(x, axes=(-2, -1), norm='forward')
    xh = jnp.fft.fftshift(xh, axes=(-2,))
    out_fft = xh[:, :, :m1, :m2c] * params['R']
    out_fft = jnp.fft.fftshift(out_fft, axes=(-2,))
    x_fno = jnp.fft.irfftn(out_fft, s=(H, W), axes=(-2, -1), norm='forward')
    x_fno = x_fno.astype(jnp.float32)

    # --- fused skip conv + ChannelMLP + residual + activation ---------------
    HW = H * W
    x_cm = x.reshape(B, C, HW)            # channels-major: pure reshape of NCHW
    xf_cm = x_fno.reshape(B, C, HW)

    Ch = params['W1'].shape[0]
    Chp = max(8, ((Ch + 7) // 8) * 8)     # pad hidden dim to sublane granularity
    w1_p = jnp.zeros((Chp, C), jnp.float32).at[:Ch, :].set(params['W1'])
    b1_p = jnp.zeros((Chp, 1), jnp.float32).at[:Ch, 0].set(params['b1'])
    w2_p = jnp.zeros((C, Chp), jnp.float32).at[:, :Ch].set(params['W2'])
    w_skip = params['Ww']
    if model_type == 'skip':              # identity residual folded into skip conv
        w_skip = w_skip + jnp.eye(C, dtype=jnp.float32)
    w_cat = jnp.concatenate([w_skip, w2_p], axis=1)          # (C, C + Chp)
    b_cat = (params['bw'] + params['b2']).reshape(C, 1)

    apply_act = (idx != n_layers - 1)
    out_cm = fno_fused(x_cm, xf_cm, w_cat, b_cat, w1_p, b1_p,
                       apply_act=apply_act)
    return out_cm.reshape(B, C, H, W)


# ----------------------------------------------------------------------------
# Pure-JAX reference (mirrors the PyTorch forward) for a correctness check
# ----------------------------------------------------------------------------
def reference_forward(x, params, *, n_modes, model_type, idx, n_layers):
    B, C, H, W = x.shape
    m1, m2c = n_modes
    xh = jnp.fft.rfftn(x, axes=(-2, -1), norm='forward')
    xh = jnp.fft.fftshift(xh, axes=(-2,))
    out_fft = xh[:, :, :m1, :m2c] * params['R']
    out_fft = jnp.fft.fftshift(out_fft, axes=(-2,))
    x_fno = jnp.fft.irfftn(out_fft, s=(H, W), axes=(-2, -1), norm='forward')

    def conv1x1(z, w, b):  # z: (B,C,H,W), w: (Cout,Cin), b: (Cout,)
        return jnp.einsum('bchw,oc->bohw', z, w) + b[None, :, None, None]

    x_skip = conv1x1(x, params['Ww'], params['bw'])
    h = _gelu_exact(conv1x1(x_fno, params['W1'], params['b1']))
    mlp = conv1x1(h, params['W2'], params['b2'])
    y = x_skip + mlp
    if model_type == 'skip':
        y = y + x
    if idx != n_layers - 1:
        y = _gelu_exact(y)
    return y


if __name__ == "__main__":
    # FNOBlock(model_type='skip', n_modes=(8, 8), hidden_channels=8,
    #          n_layers=2, channel_mlp_expansion=0.5), idx=0, output_shape=None
    B, C, H, W = 2, 8, 16, 16
    n_modes_raw = (8, 8)
    n_modes = (n_modes_raw[0], n_modes_raw[1] // 2 + 1)   # setter: last -> //2 + 1
    Ch = round(C * 0.5)
    model_type = 'skip'
    n_layers = 2
    idx = 0

    key = jax.random.PRNGKey(0)
    ks = jax.random.split(key, 8)
    init_std = (1.0 / C) ** 0.5
    params = {
        'R':  init_std * jax.random.normal(ks[0], (C, n_modes[0], n_modes[1]), jnp.float32),
        'Ww': 0.1 * jax.random.normal(ks[1], (C, C), jnp.float32),   # Conv1d(C->C, k=1)
        'bw': 0.1 * jax.random.normal(ks[2], (C,), jnp.float32),
        'W1': 0.1 * jax.random.normal(ks[3], (Ch, C), jnp.float32),  # Conv1d(C->Ch, k=1)
        'b1': 0.1 * jax.random.normal(ks[4], (Ch,), jnp.float32),
        'W2': 0.1 * jax.random.normal(ks[5], (C, Ch), jnp.float32),  # Conv1d(Ch->C, k=1)
        'b2': 0.1 * jax.random.normal(ks[6], (C,), jnp.float32),
    }
    x = jax.random.normal(ks[7], (B, C, H, W), jnp.float32)

    out = fno_block_forward(x, params, n_modes=n_modes, model_type=model_type,
                            idx=idx, n_layers=n_layers)
    out = jax.block_until_ready(out)

    ref = reference_forward(x, params, n_modes=n_modes, model_type=model_type,
                            idx=idx, n_layers=n_layers)
    ref = jax.block_until_ready(ref)

    assert out.shape == (B, C, H, W) and out.dtype == jnp.float32
    assert jnp.allclose(out, ref, rtol=1e-4, atol=5e-5), (
        float(jnp.max(jnp.abs(out - ref))))
    print("KERNEL_OK")
</pallas_src>

<mosaic_0001>
module attributes {stable_mosaic.version = 11 : i64} {
  func.func @_fno_fused_kernel(%arg0: i32, %arg1: i32, %arg2: memref<1x8x256xf32, #tpu.memory_space<vmem>>, %arg3: memref<1x8x256xf32, #tpu.memory_space<vmem>>, %arg4: memref<8x16xf32, #tpu.memory_space<vmem>>, %arg5: memref<8x1xf32, #tpu.memory_space<vmem>>, %arg6: memref<8x8xf32, #tpu.memory_space<vmem>>, %arg7: memref<8x1xf32, #tpu.memory_space<vmem>>, %arg8: memref<1x8x256xf32, #tpu.memory_space<vmem>>) attributes {dimension_semantics = [#tpu.dimension_semantics<parallel>, #tpu.dimension_semantics<parallel>], iteration_bounds = array<i64: 2, 1>, scalar_prefetch = 0 : i64, scratch_operands = 0 : i64, tpu.core_type = #tpu.core_type<tc>, window_params = [{transform_indices = @transform_0, window_bounds = array<i64: 1, 8, 256>}, {transform_indices = @transform_1, window_bounds = array<i64: 1, 8, 256>}, {pipeline_mode = #tpu.pipeline_mode<synchronous>, transform_indices = @transform_2, window_bounds = array<i64: 8, 16>}, {pipeline_mode = #tpu.pipeline_mode<synchronous>, transform_indices = @transform_3, window_bounds = array<i64: 8, 1>}, {pipeline_mode = #tpu.pipeline_mode<synchronous>, transform_indices = @transform_4, window_bounds = array<i64: 8, 8>}, {pipeline_mode = #tpu.pipeline_mode<synchronous>, transform_indices = @transform_5, window_bounds = array<i64: 8, 1>}, {transform_indices = @transform_6, window_bounds = array<i64: 1, 8, 256>}]} {
    %c0 = arith.constant 0 : index
    %c0_0 = arith.constant 0 : index
    %c0_1 = arith.constant 0 : index
    %0 = vector.load %arg2[%c0, %c0_0, %c0_1] : memref<1x8x256xf32, #tpu.memory_space<vmem>>, vector<1x8x256xf32>
    %1 = vector.shape_cast %0 : vector<1x8x256xf32> to vector<8x256xf32>
    %c0_2 = arith.constant 0 : index
    %c0_3 = arith.constant 0 : index
    %c0_4 = arith.constant 0 : index
    %2 = vector.load %arg3[%c0_2, %c0_3, %c0_4] : memref<1x8x256xf32, #tpu.memory_space<vmem>>, vector<1x8x256xf32>
    %3 = vector.shape_cast %2 : vector<1x8x256xf32> to vector<8x256xf32>
    %c0_5 = arith.constant 0 : index
    %c0_6 = arith.constant 0 : index
    %4 = vector.load %arg6[%c0_5, %c0_6] : memref<8x8xf32, #tpu.memory_space<vmem>>, vector<8x8xf32>
    %cst = arith.constant dense<0.000000e+00> : vector<8x256xf32>
    %5 = tpu.matmul %4, %3, %cst {dimension_numbers = #tpu.dot_dimension_numbers<[1], [0], [0], [1], [0, 0, 1, 1], [], []>} : vector<8x8xf32>, vector<8x256xf32>, vector<8x256xf32> -> vector<8x256xf32>
    %c0_7 = arith.constant 0 : index
    %c0_8 = arith.constant 0 : index
    %6 = vector.load %arg7[%c0_7, %c0_8] : memref<8x1xf32, #tpu.memory_space<vmem>>, vector<8x1xf32>
    %7 = vector.broadcast %6 : vector<8x1xf32> to vector<8x256xf32>
    %8 = arith.addf %5, %7 : vector<8x256xf32>
    %cst_9 = arith.constant 5.000000e-01 : f32
    %9 = vector.broadcast %cst_9 : f32 to vector<8x256xf32>
    %10 = arith.mulf %9, %8 : vector<8x256xf32>
    %cst_10 = arith.constant 0.707106769 : f32
    %11 = vector.broadcast %cst_10 : f32 to vector<8x256xf32>
    %12 = arith.mulf %8, %11 : vector<8x256xf32>
    %13 = math.erf %12 : vector<8x256xf32>
    %cst_11 = arith.constant 1.000000e+00 : f32
    %14 = vector.broadcast %cst_11 : f32 to vector<8x256xf32>
    %15 = arith.addf %14, %13 : vector<8x256xf32>
    %16 = arith.mulf %10, %15 : vector<8x256xf32>
    %17 = tpu.concatenate %1, %16 in 0 : vector<8x256xf32>, vector<8x256xf32> -> vector<16x256xf32>
    %c0_12 = arith.constant 0 : index
    %c0_13 = arith.constant 0 : index
    %18 = vector.load %arg4[%c0_12, %c0_13] : memref<8x16xf32, #tpu.memory_space<vmem>>, vector<8x16xf32>
    %cst_14 = arith.constant dense<0.000000e+00> : vector<8x256xf32>
    %19 = tpu.matmul %18, %17, %cst_14 {dimension_numbers = #tpu.dot_dimension_numbers<[1], [0], [0], [1], [0, 0, 1, 1], [], []>} : vector<8x16xf32>, vector<16x256xf32>, vector<8x256xf32> -> vector<8x256xf32>
    %c0_15 = arith.constant 0 : index
    %c0_16 = arith.constant 0 : index
    %20 = vector.load %arg5[%c0_15, %c0_16] : memref<8x1xf32, #tpu.memory_space<vmem>>, vector<8x1xf32>
    %21 = vector.broadcast %20 : vector<8x1xf32> to vector<8x256xf32>
    %22 = arith.addf %19, %21 : vector<8x256xf32>
    %cst_17 = arith.constant 5.000000e-01 : f32
    %23 = vector.broadcast %cst_17 : f32 to vector<8x256xf32>
    %24 = arith.mulf %23, %22 : vector<8x256xf32>
    %cst_18 = arith.constant 0.707106769 : f32
    %25 = vector.broadcast %cst_18 : f32 to vector<8x256xf32>
    %26 = arith.mulf %22, %25 : vector<8x256xf32>
    %27 = math.erf %26 : vector<8x256xf32>
    %cst_19 = arith.constant 1.000000e+00 : f32
    %28 = vector.broadcast %cst_19 : f32 to vector<8x256xf32>
    %29 = arith.addf %28, %27 : vector<8x256xf32>
    %30 = arith.mulf %24, %29 : vector<8x256xf32>
    %c0_20 = arith.constant 0 : index
    %c0_21 = arith.constant 0 : index
    %c0_22 = arith.constant 0 : index
    %31 = vector.load %arg8[%c0_20, %c0_21, %c0_22] : memref<1x8x256xf32, #tpu.memory_space<vmem>>, vector<1x8x256xf32>
    %32 = vector.shape_cast %31 : vector<1x8x256xf32> to vector<8x256xf32>
    %33 = vector.shape_cast %30 : vector<8x256xf32> to vector<1x8x256xf32>
    tpu.vector_store %arg8[%c0_20, %c0_21, %c0_22], %33 {strides = array<i32>} : memref<1x8x256xf32, #tpu.memory_space<vmem>>, vector<1x8x256xf32>,
    return
  }
  func.func @transform_0(%arg0: i32, %arg1: i32) -> (i32, i32, i32) {
    %c0_i32 = arith.constant 0 : i32
    %c0_i32_0 = arith.constant 0 : i32
    return %arg0, %c0_i32, %arg1 : i32, i32, i32
  }
  func.func @transform_1(%arg0: i32, %arg1: i32) -> (i32, i32, i32) {
    %c0_i32 = arith.constant 0 : i32
    %c0_i32_0 = arith.constant 0 : i32
    return %arg0, %c0_i32, %arg1 : i32, i32, i32
  }
  func.func @transform_2(%arg0: i32, %arg1: i32) -> (i32, i32) {
    %c0_i32 = arith.constant 0 : i32
    %c0_i32_0 = arith.constant 0 : i32
    %c0_i32_1 = arith.constant 0 : i32
    return %c0_i32, %c0_i32_0 : i32, i32
  }
  func.func @transform_3(%arg0: i32, %arg1: i32) -> (i32, i32) {
    %c0_i32 = arith.constant 0 : i32
    %c0_i32_0 = arith.constant 0 : i32
    %c0_i32_1 = arith.constant 0 : i32
    return %c0_i32, %c0_i32_0 : i32, i32
  }
  func.func @transform_4(%arg0: i32, %arg1: i32) -> (i32, i32) {
    %c0_i32 = arith.constant 0 : i32
    %c0_i32_0 = arith.constant 0 : i32
    %c0_i32_1 = arith.constant 0 : i32
    return %c0_i32, %c0_i32_0 : i32, i32
  }
  func.func @transform_5(%arg0: i32, %arg1: i32) -> (i32, i32) {
    %c0_i32 = arith.constant 0 : i32
    %c0_i32_0 = arith.constant 0 : i32
    %c0_i32_1 = arith.constant 0 : i32
    return %c0_i32, %c0_i32_0 : i32, i32
  }
  func.func @transform_6(%arg0: i32, %arg1: i32) -> (i32, i32, i32) {
    %c0_i32 = arith.constant 0 : i32
    %c0_i32_0 = arith.constant 0 : i32
    return %arg0, %c0_i32, %arg1 : i32, i32, i32
  }
}

</mosaic_0001>

<llo_original>
// kernel: tpu_custom_call.1
$region0: #{tpu_custom_call.1}
  #allocation0 [shape = 'u32[]', space=smem, size = 0x4, offset = 0x4, fixed_abs, tag = 'smem constant byte address 0x4 - core index']
  #allocation1 [shape = 'u32[144,128]{1,0:T(1,128)}', space=vmem, size = 0x12000, scoped, tag = 'internal scratch']
  %s0 = inlined_call_operand.hbm [shape: f32[2,8,256], index: 0, kind: input, shape index: {}]
  %s1 = inlined_call_operand.hbm [shape: f32[2,8,256], index: 1, kind: input, shape index: {}]
  %s2 = inlined_call_operand.vmem [shape: f32[8,16], index: 2, kind: input, shape index: {}]
  %s3 = inlined_call_operand.vmem [shape: f32[8,1], index: 3, kind: input, shape index: {}]
  %s4 = inlined_call_operand.vmem [shape: f32[8,8], index: 4, kind: input, shape index: {}]
  %s5 = inlined_call_operand.vmem [shape: f32[8,1], index: 5, kind: input, shape index: {}]
  %s6 = inlined_call_operand.hbm [shape: f32[2,8,256], index: 6, kind: output, shape index: {}]
  %s7 = sld [smem:[#allocation0]]
  $region65: #{tpu_custom_call.1} parent=0
    _
  %s9 = ssub.s32 1, %s7
  %s10 = scalar_select 0, %s9, %s7
  $region1: #{tpu_custom_call.1} parent=0
    #allocation2 [shape = 'u8[16384]{0}', space=vmem, size = 0x4000, scoped, tag = 'input window, operand 0']
    #allocation3 [shape = 's32[2]{0}', space=sflag, size = 0x8, scoped, tag = 'scoped memory for tpu_custom_call.1']
    #allocation4 [shape = 's32[2]{0}', space=sflag, size = 0x8, scoped, tag = 'scoped memory for tpu_custom_call.1']
    #allocation5 [shape = 'u8[16384]{0}', space=vmem, size = 0x4000, scoped, tag = 'input window, operand 1']
    #allocation6 [shape = 's32[2]{0}', space=sflag, size = 0x8, scoped, tag = 'scoped memory for tpu_custom_call.1']
    #allocation7 [shape = 'u8[16384]{0}', space=vmem, size = 0x4000, scoped, tag = 'output window, operand 0']
    %11 = vsyncpa [#allocation3], 0
    %s12 = scalar_lea.sflag [#allocation3], 1
    %13 = vsyncpa %s12, 0
    %14 = vsyncpa [#allocation6], 0
    %s15 = scalar_lea.sflag [#allocation6], 1
    %16 = vsyncpa %s15, 0
    %17 = vsyncpa [#allocation4], 0
    %s18 = scalar_lea.sflag [#allocation4], 1
    %19 = vsyncpa %s18, 0
    loop: start=0, step=1, limit=4
    $region2: #{tpu_custom_call.1} parent=1 // loop_pre_header
      _
    $region3: #{tpu_custom_call.1} parent=1 // loop_header
      %s21 = sphi 0, %s25
      %p22 = scmp.ge.s32.totalorder %s21, 4
      %s28 = sphi 0, %s40
      %s29 = sphi 0, %s36
      %s30 = sphi 0, %s28
      %s31 = sphi 0, %s29
      %s32 = sphi 0, %s30
      %s33 = sphi 0, %s31
      %s45 = sphi 0, %s47
      %s48 = sphi 0, %s45
      %s49 = sphi 0, %s48
      %s65 = sphi 0, %s49
      %s73 = sphi 0, %s75
      %s76 = sphi 0, %s73
      %s77 = sphi 0, %s76
      %s93 = sphi 0, %s77
      %s97 = sphi 0, %s97
      %s99 = sphi 0, %s97
      %s100 = sphi 0, %s99
      %s114 = sphi 0, %s100
      %s118 = sphi 0, %s118
      %s120 = sphi 0, %s118
      %s121 = sphi 0, %s120
      %s135 = sphi 0, %s121
      %s139 = sphi 0, %s139
      %s141 = sphi 0, %s139
      %s142 = sphi 0, %s141
      %s156 = sphi 0, %s142
      %s160 = sphi 0, %s160
      %s162 = sphi 0, %s160
      %s163 = sphi 0, %s162
      %s177 = sphi 0, %s163
      %s185 = sphi 0, %s187
      %s188 = sphi 0, %s185
      %s189 = sphi 0, %s188
      %s205 = sphi 0, %s189
    $region4: #{tpu_custom_call.1} parent=1 // loop_header_branch
      %24 = sbr.rel (%p22) target = $region8
    $region5: #{tpu_custom_call.1} parent=1 // loop_body
      %s26 = ssub.s32 %s21, 1
      %s27 = ssub.s32 %s21, 2
      %s34 = sadd.s32 1, %s29
      %p35 = scmp.ge.s32.totalorder %s34, 1
      %s36 = scalar_select %p35, 0, %s34
      %s37 = sadd.s32 1, %s28
      %s38 = scalar_select %p35, %s37, %s28
      %p39 = scmp.ge.s32.totalorder %s38, 2
      %s40 = scalar_select %p39, 0, %s38
      %s41 = ssub.s32 %s28, %s40
      %s42 = ssub.s32 %s29, %s36
      %s43 = sor.u32 %s41, %s42
      %p44 = scmp.eq.s32.totalorder %s43, 0
      %s46 = sadd.s32 %s45, 1
      %s47 = scalar_select %p44, %s45, %s46
      %p50 = pneg %p44
      %p51 = scmp.eq.s32.totalorder %s21, 1
      %p52 = por %p50, %p51
      %p53 = scmp.ne.s32.totalorder %s45, %s48
      %p54 = scmp.eq.s32.totalorder %s21, 0
      %p55 = por %p53, %p54
      %p56 = scmp.ne.s32.totalorder %s45, %s48
      %p57 = scmp.eq.s32.totalorder %s26, 1
      %p58 = por %p56, %p57
      %p59 = scmp.ne.s32.totalorder %s48, %s49
      %p60 = scmp.eq.s32.totalorder %s26, 0
      %p61 = por %p59, %p60
      %p62 = scmp.ne.s32.totalorder %s48, %s49
      %p63 = scmp.eq.s32.totalorder %s27, 1
      %p64 = por %p62, %p63
      %p66 = scmp.ne.s32.totalorder %s49, %s65
      %p67 = scmp.eq.s32.totalorder %s27, 0
      %p68 = por %p66, %p67
      %s69 = ssub.s32 %s28, %s40
      %s70 = ssub.s32 %s29, %s36
      %s71 = sor.u32 %s69, %s70
      %p72 = scmp.eq.s32.totalorder %s71, 0
      %s74 = sadd.s32 %s73, 1
      %s75 = scalar_select %p72, %s73, %s74
      %p78 = pneg %p72
      %p79 = scmp.eq.s32.totalorder %s21, 1
      %p80 = por %p78, %p79
      %p81 = scmp.ne.s32.totalorder %s73, %s76
      %p82 = scmp.eq.s32.totalorder %s21, 0
      %p83 = por %p81, %p82
      %p84 = scmp.ne.s32.totalorder %s73, %s76
      %p85 = scmp.eq.s32.totalorder %s26, 1
      %p86 = por %p84, %p85
      %p87 = scmp.ne.s32.totalorder %s76, %s77
      %p88 = scmp.eq.s32.totalorder %s26, 0
      %p89 = por %p87, %p88
      %p90 = scmp.ne.s32.totalorder %s76, %s77
      %p91 = scmp.eq.s32.totalorder %s27, 1
      %p92 = por %p90, %p91
      %p94 = scmp.ne.s32.totalorder %s77, %s93
      %p95 = scmp.eq.s32.totalorder %s27, 0
      %p96 = por %p94, %p95
      %s98 = sadd.s32 %s97, 1
      %p101 = scmp.eq.s32.totalorder %s21, 1
      %p102 = scmp.ne.s32.totalorder %s97, %s99
      %p103 = scmp.eq.s32.totalorder %s21, 0
      %p104 = por %p102, %p103
      %p105 = scmp.ne.s32.totalorder %s97, %s99
      %p106 = scmp.eq.s32.totalorder %s26, 1
      %p107 = por %p105, %p106
      %p108 = scmp.ne.s32.totalorder %s99, %s100
      %p109 = scmp.eq.s32.totalorder %s26, 0
      %p110 = por %p108, %p109
      %p111 = scmp.ne.s32.totalorder %s99, %s100
      %p112 = scmp.eq.s32.totalorder %s27, 1
      %p113 = por %p111, %p112
      %p115 = scmp.ne.s32.totalorder %s100, %s114
      %p116 = scmp.eq.s32.totalorder %s27, 0
      %p117 = por %p115, %p116
      %s119 = sadd.s32 %s118, 1
      %p122 = scmp.eq.s32.totalorder %s21, 1
      %p123 = scmp.ne.s32.totalorder %s118, %s120
      %p124 = scmp.eq.s32.totalorder %s21, 0
      %p125 = por %p123, %p124
      %p126 = scmp.ne.s32.totalorder %s118, %s120
      %p127 = scmp.eq.s32.totalorder %s26, 1
      %p128 = por %p126, %p127
      %p129 = scmp.ne.s32.totalorder %s120, %s121
      %p130 = scmp.eq.s32.totalorder %s26, 0
      %p131 = por %p129, %p130
      %p132 = scmp.ne.s32.totalorder %s120, %s121
      %p133 = scmp.eq.s32.totalorder %s27, 1
      %p134 = por %p132, %p133
      %p136 = scmp.ne.s32.totalorder %s121, %s135
      %p137 = scmp.eq.s32.totalorder %s27, 0
      %p138 = por %p136, %p137
      %s140 = sadd.s32 %s139, 1
      %p143 = scmp.eq.s32.totalorder %s21, 1
      %p144 = scmp.ne.s32.totalorder %s139, %s141
      %p145 = scmp.eq.s32.totalorder %s21, 0
      %p146 = por %p144, %p145
      %p147 = scmp.ne.s32.totalorder %s139, %s141
      %p148 = scmp.eq.s32.totalorder %s26, 1
      %p149 = por %p147, %p148
      %p150 = scmp.ne.s32.totalorder %s141, %s142
      %p151 = scmp.eq.s32.totalorder %s26, 0
      %p152 = por %p150, %p151
      %p153 = scmp.ne.s32.totalorder %s141, %s142
      %p154 = scmp.eq.s32.totalorder %s27, 1
      %p155 = por %p153, %p154
      %p157 = scmp.ne.s32.totalorder %s142, %s156
      %p158 = scmp.eq.s32.totalorder %s27, 0
      %p159 = por %p157, %p158
      %s161 = sadd.s32 %s160, 1
      %p164 = scmp.eq.s32.totalorder %s21, 1
      %p165 = scmp.ne.s32.totalorder %s160, %s162
      %p166 = scmp.eq.s32.totalorder %s21, 0
      %p167 = por %p165, %p166
      %p168 = scmp.ne.s32.totalorder %s160, %s162
      %p169 = scmp.eq.s32.totalorder %s26, 1
      %p170 = por %p168, %p169
      %p171 = scmp.ne.s32.totalorder %s162, %s163
      %p172 = scmp.eq.s32.totalorder %s26, 0
      %p173 = por %p171, %p172
      %p174 = scmp.ne.s32.totalorder %s162, %s163
      %p175 = scmp.eq.s32.totalorder %s27, 1
      %p176 = por %p174, %p175
      %p178 = scmp.ne.s32.totalorder %s163, %s177
      %p179 = scmp.eq.s32.totalorder %s27, 0
      %p180 = por %p178, %p179
      %s181 = ssub.s32 %s28, %s40
      %s182 = ssub.s32 %s29, %s36
      %s183 = sor.u32 %s181, %s182
      %p184 = scmp.eq.s32.totalorder %s183, 0
      %s186 = sadd.s32 %s185, 1
      %s187 = scalar_select %p184, %s185, %s186
      %p190 = pneg %p184
      %p191 = scmp.eq.s32.totalorder %s21, 1
      %p192 = por %p190, %p191
      %p193 = scmp.ne.s32.totalorder %s185, %s188
      %p194 = scmp.eq.s32.totalorder %s21, 0
      %p195 = por %p193, %p194
      %p196 = scmp.ne.s32.totalorder %s185, %s188
      %p197 = scmp.eq.s32.totalorder %s26, 1
      %p198 = por %p196, %p197
      %p199 = scmp.ne.s32.totalorder %s188, %s189
      %p200 = scmp.eq.s32.totalorder %s26, 0
      %p201 = por %p199, %p200
      %p202 = scmp.ne.s32.totalorder %s188, %s189
      %p203 = scmp.eq.s32.totalorder %s27, 1
      %p204 = por %p202, %p203
      %p206 = scmp.ne.s32.totalorder %s189, %s205
      %p207 = scmp.eq.s32.totalorder %s27, 0
      %p208 = por %p206, %p207
      %p209 = scmp.le.s32.totalorder 1, %s21
      %p210 = scmp.lt.s32.totalorder %s21, 3
      %p211 = pnand %p209, %p210
      %p212 = pneg %p211
      // Predicated region
      $region9: #{tpu_custom_call.1} parent=5 // pred_check
        _
      $region10: #{tpu_custom_call.1} parent=5 // pred_check_branch
        %214 = sbr.rel (%p211) target = $region12
      $region11: #{tpu_custom_call.1} parent=5 // pred_region
        %s215 = ssub.s32 %s21, 1
        // Predicated region
        $region13: #{tpu_custom_call.1} parent=11 // pred_check
          %p216 = pneg %p110
        $region14: #{tpu_custom_call.1} parent=11 // pred_check_branch
          %218 = sbr.rel (%p216) target = $region16
        $region15: #{tpu_custom_call.1} parent=11 // pred_region
          _
        $region16: #{tpu_custom_call.1} parent=11 // pred_fallthru
          _
        // Predicated region
        $region17: #{tpu_custom_call.1} parent=11 // pred_check
          %p219 = pneg %p131
        $region18: #{tpu_custom_call.1} parent=11 // pred_check_branch
          %221 = sbr.rel (%p219) target = $region20
        $region19: #{tpu_custom_call.1} parent=11 // pred_region
          _
        $region20: #{tpu_custom_call.1} parent=11 // pred_fallthru
          _
        // Predicated region
        $region21: #{tpu_custom_call.1} parent=11 // pred_check
          %p222 = pneg %p152
        $region22: #{tpu_custom_call.1} parent=11 // pred_check_branch
          %224 = sbr.rel (%p222) target = $region24
        $region23: #{tpu_custom_call.1} parent=11 // pred_region
          _
        $region24: #{tpu_custom_call.1} parent=11 // pred_fallthru
          _
        // Predicated region
        $region25: #{tpu_custom_call.1} parent=11 // pred_check
          %p225 = pneg %p173
        $region26: #{tpu_custom_call.1} parent=11 // pred_check_branch
          %227 = sbr.rel (%p225) target = $region28
        $region27: #{tpu_custom_call.1} parent=11 // pred_region
          _
        $region28: #{tpu_custom_call.1} parent=11 // pred_fallthru
          _
      $region12: #{tpu_custom_call.1} parent=5 // pred_fallthru
        _
      %p228 = scmp.lt.s32.totalorder %s21, 2
      // Predicated region
      $region29: #{tpu_custom_call.1} parent=5 // pred_check
        %p229 = pneg %p228
      $region30: #{tpu_custom_call.1} parent=5 // pred_check_branch
        %231 = sbr.rel (%p229) target = $region32
      $region31: #{tpu_custom_call.1} parent=5 // pred_region
        // Predicated region
        $region33: #{tpu_custom_call.1} parent=31 // pred_check
          %p232 = pneg %p55
        $region34: #{tpu_custom_call.1} parent=31 // pred_check_branch
          %234 = sbr.rel (%p232) target = $region36
        $region35: #{tpu_custom_call.1} parent=31 // pred_region
          %s235 = sand.u32 %s45, 1
          %s236 = scalar_lea.sflag [#allocation3], %s235
          %s237 = sand.u32 %s45, 1
          %s238 = smul.addr %s237, 16
          %s239 = scalar_lea.vmem [#allocation2], %s238
          %s240 = smul.u32 2, %s29
          %s242 = ssub.s32 256, 256
          %243 = vsyncadd %s236, %s242
          %s244 = smul.addr %s28, 2
          %s245 = sadd.s32 %s240, %s244
          %s246 = smul.addr %s245, 128
          %s247 = scalar_lea.hbm %s0, %s246
          %s249 = sshll.u32 %s239, 4
          %s250 = int_to_ptr.vmem [resolvable:$true] %s249
          %252 = dma.hbm_to_vmem [thread:$0]  %s247, 256, %s250, %s236
        $region36: #{tpu_custom_call.1} parent=31 // pred_fallthru
          _
        // Predicated region
        $region37: #{tpu_custom_call.1} parent=31 // pred_check
          %p253 = pneg %p83
        $region38: #{tpu_custom_call.1} parent=31 // pred_check_branch
          %255 = sbr.rel (%p253) target = $region40
        $region39: #{tpu_custom_call.1} parent=31 // pred_region
          %s256 = sand.u32 %s73, 1
          %s257 = scalar_lea.sflag [#allocation6], %s256
          %s258 = sand.u32 %s73, 1
          %s259 = smul.addr %s258, 16
          %s260 = scalar_lea.vmem [#allocation5], %s259
          %s261 = smul.u32 2, %s29
          %s263 = ssub.s32 256, 256
          %264 = vsyncadd %s257, %s263
          %s265 = smul.addr %s28, 2
          %s266 = sadd.s32 %s261, %s265
          %s267 = smul.addr %s266, 128
          %s268 = scalar_lea.hbm %s1, %s267
          %s270 = sshll.u32 %s260, 4
          %s271 = int_to_ptr.vmem [resolvable:$true] %s270
          %273 = dma.hbm_to_vmem [thread:$0]  %s268, 256, %s271, %s257
        $region40: #{tpu_custom_call.1} parent=31 // pred_fallthru
          _
      $region32: #{tpu_custom_call.1} parent=5 // pred_fallthru
        _
      %p274 = scmp.le.s32.totalorder 1, %s21
      %p275 = scmp.lt.s32.totalorder %s21, 3
      %p276 = pnand %p274, %p275
      %p277 = pneg %p276
      // Predicated region
      $region41: #{tpu_custom_call.1} parent=5 // pred_check
        _
      $region42: #{tpu_custom_call.1} parent=5 // pred_check_branch
        %279 = sbr.rel (%p276) target = $region44
      $region43: #{tpu_custom_call.1} parent=5 // pred_region
        %s280 = ssub.s32 %s21, 1
        %s281 = sand.u32 %s48, 1
        %s282 = scalar_lea.sflag [#allocation3], %s281
        %s283 = sand.u32 %s48, 1
        %s284 = smul.addr %s283, 16
        %s285 = scalar_lea.vmem [#allocation2], %s284
        // Predicated region
        $region45: #{tpu_custom_call.1} parent=43 // pred_check
          %p286 = pneg %p61
        $region46: #{tpu_custom_call.1} parent=43 // pred_check_branch
          %288 = sbr.rel (%p286) target = $region48
        $region47: #{tpu_custom_call.1} parent=43 // pred_region
          %289 = dma.done %s282, 256
        $region48: #{tpu_custom_call.1} parent=43 // pred_fallthru
          _
        %s290 = sand.u32 %s76, 1
        %s291 = scalar_lea.sflag [#allocation6], %s290
        %s292 = sand.u32 %s76, 1
        %s293 = smul.addr %s292, 16
        %s294 = scalar_lea.vmem [#allocation5], %s293
        // Predicated region
        $region49: #{tpu_custom_call.1} parent=43 // pred_check
          %p295 = pneg %p89
        $region50: #{tpu_custom_call.1} parent=43 // pred_check_branch
          %297 = sbr.rel (%p295) target = $region52
        $region51: #{tpu_custom_call.1} parent=43 // pred_region
          %298 = dma.done %s291, 256
        $region52: #{tpu_custom_call.1} parent=43 // pred_fallthru
          _
        %s299 = sand.u32 %s48, 1
        %s300 = scalar_lea.sflag [#allocation3], %s299
        %s301 = sand.u32 %s48, 1
        %s302 = smul.addr %s301, 16
        %s303 = scalar_lea.vmem [#allocation2], %s302
        %p304 = pneg %p61
        %p305 = pneg %p58
        %s306 = sand.u32 %s76, 1
        %s307 = scalar_lea.sflag [#allocation6], %s306
        %s308 = sand.u32 %s76, 1
        %s309 = smul.addr %s308, 16
        %s310 = scalar_lea.vmem [#allocation5], %s309
        %p311 = pneg %p89
        %p312 = pneg %p86
        %p313 = pneg %p110
        %p314 = pneg %p107
        %p315 = pneg %p131
        %p316 = pneg %p128
        %p317 = pneg %p152
        %p318 = pneg %p149
        %p319 = pneg %p173
        %p320 = pneg %p170
        %p321 = pneg %p201
        %p322 = pneg %p198
        %s323 = sand.u32 %s188, 1
        %s324 = scalar_lea.sflag [#allocation4], %s323
        %s325 = sand.u32 %s188, 1
        %s326 = smul.addr %s325, 16
        %s327 = scalar_lea.vmem [#allocation7], %s326
        %s328 = smul.u32 2, %s31
        %s329 = smul.u32 2, %s31
        %s330 = smul.u32 2, %s31
        %v331 = vld [vmem:[%s285] sm:$0xff]
        %v332 = vld [vmem:[%s285 + $0x8] sm:$0xff]
        %v333 = vld [vmem:[%s294] sm:$0xff]
        %v334 = vld [vmem:[%s294 + $0x8] sm:$0xff]
        %v335 = vld [vmem:[%s4] sm:$0xff]
        %v336 = vld [vmem:[%s5] sm:$0xff]
        %338 = vset.pattern.permute.xlu0 0
        %339 = vperm.xlu0 %338, %v336
        %v340 = vpop.permute.xlu0 %339
        %vm342 = vcmask 64512
        %v344 = vsel %vm342, %v335, 0
        %346 = vmatprep.subr.mxu0 %v334
        %347 = vmatpush1.msra.mxu0 %v333
        %348 = vmatprep.subr.mxu0 0.0
        %349 = vmatpush1.msra.mxu0 0.0
        %350 = vmatprep.subr.mxu0 0.0
        %351 = vmatpush1.msra.mxu0 0.0
        %352 = vmatprep.subr.mxu0 0.0
        %353 = vmatpush1.msra.mxu0 0.0
        %354 = vmatprep.subr.mxu0 0.0
        %355 = vmatpush1.msra.mxu0 0.0
        %356 = vmatprep.subr.mxu0 0.0
        %357 = vmatpush1.msra.mxu0 0.0
        %358 = vmatprep.subr.mxu0 0.0
        %359 = vmatpush1.msra.mxu0 0.0
        %360 = vmatprep.subr.mxu0 0.0
        %361 = vmatpush1.msra.mxu0 0.0
        %362 = vmatprep.subr.mxu0 0.0
        %363 = vmatpush1.msra.mxu0 0.0
        %364 = vmatprep.subr.mxu0 0.0
        %365 = vmatpush1.msra.mxu0 0.0
        %366 = vmatprep.subr.mxu0 0.0
        %367 = vmatpush1.msra.mxu0 0.0
        %368 = vmatprep.subr.mxu0 0.0
        %369 = vmatpush1.msra.mxu0 0.0
        %370 = vmatprep.subr.mxu0 0.0
        %371 = vmatpush1.msra.mxu0 0.0
        %372 = vmatprep.subr.mxu0 0.0
        %373 = vmatpush1.msra.mxu0 0.0
        %374 = vmatprep.subr.mxu0 0.0
        %375 = vmatpush1.msra.mxu0 0.0
        %376 = vmatprep.subr.mxu0 0.0
        %377 = vmatpush1.msra.mxu0 0.0
        %378 = vmatprep.subr.mxu0 0.0
        %379 = vmatpush1.msra.mxu0 0.0
        %380 = vmatprep.subr.mxu0 0.0
        %381 = vmatpush1.msra.mxu0 0.0
        %382 = vmatprep.subr.mxu0 0.0
        %383 = vmatpush1.msra.mxu0 0.0
        %384 = vmatprep.subr.mxu0 0.0
        %385 = vmatpush1.msra.mxu0 0.0
        %386 = vmatprep.subr.mxu0 0.0
        %387 = vmatpush1.msra.mxu0 0.0
        %388 = vmatprep.subr.mxu0 0.0
        %389 = vmatpush1.msra.mxu0 0.0
        %390 = vmatprep.subr.mxu0 0.0
        %391 = vmatpush1.msra.mxu0 0.0
        %392 = vmatprep.subr.mxu0 0.0
        %393 = vmatpush1.msra.mxu0 0.0
        %394 = vmatprep.subr.mxu0 0.0
        %395 = vmatpush1.msra.mxu0 0.0
        %396 = vmatprep.subr.mxu0 0.0
        %397 = vmatpush1.msra.mxu0 0.0
        %398 = vmatprep.subr.mxu0 0.0
        %399 = vmatpush1.msra.mxu0 0.0
        %400 = vmatprep.subr.mxu0 0.0
        %401 = vmatpush1.msra.mxu0 0.0
        %402 = vmatprep.subr.mxu0 0.0
        %403 = vmatpush1.msra.mxu0 0.0
        %404 = vmatprep.subr.mxu0 0.0
        %405 = vmatpush1.msra.mxu0 0.0
        %406 = vmatprep.subr.mxu0 0.0
        %407 = vmatpush1.msra.mxu0 0.0
        %408 = vmatprep.subr.mxu0 0.0
        %409 = vmatpush1.msra.mxu0 0.0
        %410 = vmatprep.mubr.f32.mxu0 0.0
        %411 = vmatmul.mubr.f32.gmra.mrb[0].mxu0 %v344
        %v412 = vpop.f32.mrb[0].mxu0
        %v413 = vadd.f32 %v340, %v412
        %v414 = vpop.f32.mrb[0].mxu0
        %v415 = vadd.f32 %v340, %v414
        %416 = vdwg.mxu0
        %v417 = vmul.f32 %v413, 0.5
        %v418 = vmul.f32 %v415, 0.5
        %v419 = vmul.f32 %v413, 0.70710677
        %v420 = vmul.f32 %v415, 0.70710677
        %v421 = verf.f32.pop %v419
        %v422 = verf.f32.pop %v420
        %v423 = vadd.f32 %v421, 1.0
        %v424 = vadd.f32 %v422, 1.0
        %v425 = vmul.f32 %v417, %v423
        %v426 = vmul.f32 %v418, %v424
        %v427 = vld [vmem:[%s2] sm:$0xff]
        %v428 = vld [vmem:[%s3] sm:$0xff]
        %430 = vset.pattern.permute.xlu0 0
        %431 = vperm.xlu0 %430, %v428
        %v432 = vpop.permute.xlu0 %431
        %vm434 = vcmask 130048
        %v436 = vsel %vm434, %v427, 0
        %438 = vmatprep.subr.mxu0 %v332
        %439 = vmatpush1.msra.mxu0 %v331
        %440 = vmatprep.subr.mxu0 %v426
        %441 = vmatpush1.msra.mxu0 %v425
        %442 = vmatprep.subr.mxu0 0.0
        %443 = vmatpush1.msra.mxu0 0.0
        %444 = vmatprep.subr.mxu0 0.0
        %445 = vmatpush1.msra.mxu0 0.0
        %446 = vmatprep.subr.mxu0 0.0
        %447 = vmatpush1.msra.mxu0 0.0
        %448 = vmatprep.subr.mxu0 0.0
        %449 = vmatpush1.msra.mxu0 0.0
        %450 = vmatprep.subr.mxu0 0.0
        %451 = vmatpush1.msra.mxu0 0.0
        %452 = vmatprep.subr.mxu0 0.0
        %453 = vmatpush1.msra.mxu0 0.0
        %454 = vmatprep.subr.mxu0 0.0
        %455 = vmatpush1.msra.mxu0 0.0
        %456 = vmatprep.subr.mxu0 0.0
        %457 = vmatpush1.msra.mxu0 0.0
        %458 = vmatprep.subr.mxu0 0.0
        %459 = vmatpush1.msra.mxu0 0.0
        %460 = vmatprep.subr.mxu0 0.0
        %461 = vmatpush1.msra.mxu0 0.0
        %462 = vmatprep.subr.mxu0 0.0
        %463 = vmatpush1.msra.mxu0 0.0
        %464 = vmatprep.subr.mxu0 0.0
        %465 = vmatpush1.msra.mxu0 0.0
        %466 = vmatprep.subr.mxu0 0.0
        %467 = vmatpush1.msra.mxu0 0.0
        %468 = vmatprep.subr.mxu0 0.0
        %469 = vmatpush1.msra.mxu0 0.0
        %470 = vmatprep.subr.mxu0 0.0
        %471 = vmatpush1.msra.mxu0 0.0
        %472 = vmatprep.subr.mxu0 0.0
        %473 = vmatpush1.msra.mxu0 0.0
        %474 = vmatprep.subr.mxu0 0.0
        %475 = vmatpush1.msra.mxu0 0.0
        %476 = vmatprep.subr.mxu0 0.0
        %477 = vmatpush1.msra.mxu0 0.0
        %478 = vmatprep.subr.mxu0 0.0
        %479 = vmatpush1.msra.mxu0 0.0
        %480 = vmatprep.subr.mxu0 0.0
        %481 = vmatpush1.msra.mxu0 0.0
        %482 = vmatprep.subr.mxu0 0.0
        %483 = vmatpush1.msra.mxu0 0.0
        %484 = vmatprep.subr.mxu0 0.0
        %485 = vmatpush1.msra.mxu0 0.0
        %486 = vmatprep.subr.mxu0 0.0
        %487 = vmatpush1.msra.mxu0 0.0
        %488 = vmatprep.subr.mxu0 0.0
        %489 = vmatpush1.msra.mxu0 0.0
        %490 = vmatprep.subr.mxu0 0.0
        %491 = vmatpush1.msra.mxu0 0.0
        %492 = vmatprep.subr.mxu0 0.0
        %493 = vmatpush1.msra.mxu0 0.0
        %494 = vmatprep.subr.mxu0 0.0
        %495 = vmatpush1.msra.mxu0 0.0
        %496 = vmatprep.subr.mxu0 0.0
        %497 = vmatpush1.msra.mxu0 0.0
        %498 = vmatprep.subr.mxu0 0.0
        %499 = vmatpush1.msra.mxu0 0.0
        %500 = vmatprep.subr.mxu0 0.0
        %501 = vmatpush1.msra.mxu0 0.0
        %502 = vmatprep.mubr.f32.mxu0 0.0
        %503 = vmatmul.mubr.f32.gmra.mrb[0].mxu0 %v436
        %v504 = vpop.f32.mrb[0].mxu0
        %v505 = vadd.f32 %v432, %v504
        %v506 = vpop.f32.mrb[0].mxu0
        %v507 = vadd.f32 %v432, %v506
        %508 = vdwg.mxu0
        %v509 = vmul.f32 %v505, 0.5
        %v510 = vmul.f32 %v507, 0.5
        %v511 = vmul.f32 %v505, 0.70710677
        %v512 = vmul.f32 %v507, 0.70710677
        %v513 = verf.f32.pop %v511
        %v514 = verf.f32.pop %v512
        %v515 = vadd.f32 %v513, 1.0
        %v516 = vadd.f32 %v514, 1.0
        %v517 = vmul.f32 %v509, %v515
        %v518 = vmul.f32 %v510, %v516
        %519 = vst [vmem:[%s327] sm:$0xff] %v517
        %520 = vst [vmem:[%s327 + $0x8] sm:$0xff] %v518
        %s521 = sand.u32 %s188, 1
        %s522 = scalar_lea.sflag [#allocation4], %s521
        %s523 = sand.u32 %s188, 1
        %s524 = smul.addr %s523, 16
        %s525 = scalar_lea.vmem [#allocation7], %s524
        // Predicated region
        $region53: #{tpu_custom_call.1} parent=43 // pred_check
          %p526 = pneg %p198
        $region54: #{tpu_custom_call.1} parent=43 // pred_check_branch
          %528 = sbr.rel (%p526) target = $region56
        $region55: #{tpu_custom_call.1} parent=43 // pred_region
          %s529 = smul.u32 2, %s31
          %s531 = ssub.s32 256, 256
          %532 = vsyncadd %s522, %s531
          %s533 = smul.addr %s30, 2
          %s534 = sadd.s32 %s529, %s533
          %s535 = smul.addr %s534, 128
          %s536 = scalar_lea.hbm %s6, %s535
          %s538 = sshll.u32 %s525, 4
          %s539 = int_to_ptr.vmem [resolvable:$true] %s538
          %541 = dma.vmem_to_hbm [thread:$0]  %s539, 256, %s536, %s522
        $region56: #{tpu_custom_call.1} parent=43 // pred_fallthru
          _
      $region44: #{tpu_custom_call.1} parent=5 // pred_fallthru
        _
      %p542 = scmp.le.s32.totalorder 2, %s21
      // Predicated region
      $region57: #{tpu_custom_call.1} parent=5 // pred_check
        %p543 = pneg %p542
      $region58: #{tpu_custom_call.1} parent=5 // pred_check_branch
        %545 = sbr.rel (%p543) target = $region60
      $region59: #{tpu_custom_call.1} parent=5 // pred_region
        %s546 = ssub.s32 %s21, 2
        // Predicated region
        $region61: #{tpu_custom_call.1} parent=59 // pred_check
          %p547 = pneg %p204
        $region62: #{tpu_custom_call.1} parent=59 // pred_check_branch
          %549 = sbr.rel (%p547) target = $region64
        $region63: #{tpu_custom_call.1} parent=59 // pred_region
          %s550 = sand.u32 %s189, 1
          %s551 = scalar_lea.sflag [#allocation4], %s550
          %s552 = sand.u32 %s189, 1
          %s553 = smul.addr %s552, 16
          %s554 = scalar_lea.vmem [#allocation7], %s553
          %555 = dma.done %s551, 256
        $region64: #{tpu_custom_call.1} parent=59 // pred_fallthru
          _
      $region60: #{tpu_custom_call.1} parent=5 // pred_fallthru
        _
    $region6: #{tpu_custom_call.1} parent=1 // loop_footer
      %s25 = sadd.s32 1, %s21
    $region7: #{tpu_custom_call.1} parent=1 // loop_footer_branch
      %20 = sbr.rel target = $region3
    $region8: #{tpu_custom_call.1} parent=1 // loop_exit
      _
    %556 = vsyncpa [#allocation3], 1
    %s557 = scalar_lea.sflag [#allocation3], 1
    %558 = vsyncpa %s557, 1
    %559 = vsyncpa [#allocation6], 1
    %s560 = scalar_lea.sflag [#allocation6], 1
    %561 = vsyncpa %s560, 1
    %562 = vsyncpa [#allocation4], 1
    %s563 = scalar_lea.sflag [#allocation4], 1
    %564 = vsyncpa %s563, 1

</llo_original>
